<compile_context>
chip_gen: v6e
topology: v6e:2x2x1
jax: 0.10.0
libtpu: 0.0.40
codegen_flags: <defaults>
</compile_context>

<pallas_src>
import functools

import jax
import jax.numpy as jnp
from jax import lax
from jax.experimental import pallas as pl
from jax.experimental.pallas import tpu as pltpu


_VPU_EXPAND_MAX_CIN = 16   # at/below this Cin the expand 1x1 uses VPU broadcast-FMAs


def _relu6(x):
    return jnp.minimum(jnp.maximum(x, 0.0), 6.0)


def _inverted_residual_kernel(*refs, has_expand, mxu_expand, use_res, W):
    if has_expand:
        (x_ref, w1_ref, b1_ref, wdw_ref, bdw_ref, w2t_ref, b2_ref, m_ref,
         o_ref, acc_ref) = refs
    else:
        (x_ref, wdw_ref, bdw_ref, w2t_ref, b2_ref, m_ref, o_ref, acc_ref) = refs

    j = pl.program_id(1)
    x = x_ref[0]                                   # (Cin, HW) f32
    L = x.shape[1]

    # ---- 1x1 expand conv (+folded BN) + ReLU6 -> (hb, HW) f32 ----
    if has_expand:
        if mxu_expand:
            h = jnp.dot(w1_ref[...], x.astype(jnp.bfloat16),
                        preferred_element_type=jnp.float32)
        else:
            # Tiny K: broadcast-FMAs on the VPU, keep the MXU free for project.
            w1f = w1_ref[...].astype(jnp.float32)  # (hb, Cin)
            h = x[0:1, :] * w1f[:, 0:1]
            for c in range(1, w1f.shape[1]):
                h = h + x[c:c + 1, :] * w1f[:, c:c + 1]
        h = _relu6(h + b1_ref[...])
    else:
        h = x                                      # hidden == Cin, single block

    # ---- 3x3 depthwise conv (pad=1, +folded BN) + ReLU6 ----
    # Taps are circular lane rolls of h; wrapped reads are killed by
    #  * column masks baked into the tap sources (hL / hR), shared by the three
    #    dx=-1 / dx=+1 taps, and
    #  * row masks applied once to the summed dy=-1 / dy=+1 tap groups.
    keep_l = m_ref[0:1, :]        # 0 at col W-1: source mask for dx=-1 taps
    keep_r = m_ref[1:2, :]        # 0 at col 0  : source mask for dx=+1 taps
    keep_t = m_ref[2:3, :]        # 0 at row 0  : gates the dy=-1 tap group
    keep_b = m_ref[3:4, :]        # 0 at row H-1: gates the dy=+1 tap group
    hL = h * keep_l
    hR = h * keep_r
    w = wdw_ref[...]              # (hb, 9) f32, k = (dy+1)*3 + (dx+1)

    mid = h * w[:, 4:5]
    mid = mid + pltpu.roll(hL, 1, axis=1) * w[:, 3:4]
    mid = mid + pltpu.roll(hR, L - 1, axis=1) * w[:, 5:6]
    top = pltpu.roll(hL, W + 1, axis=1) * w[:, 0:1]
    top = top + pltpu.roll(h, W, axis=1) * w[:, 1:2]
    top = top + pltpu.roll(hR, W - 1, axis=1) * w[:, 2:3]
    bot = pltpu.roll(hL, L - W + 1, axis=1) * w[:, 6:7]
    bot = bot + pltpu.roll(h, L - W, axis=1) * w[:, 7:8]
    bot = bot + pltpu.roll(hR, L - W - 1, axis=1) * w[:, 8:9]
    dw = _relu6(mid + top * keep_t + bot * keep_b + bdw_ref[...])

    # ---- 1x1 project conv (+folded BN): accumulate over hidden blocks ----
    @pl.when(j == 0)
    def _():
        acc_ref[...] = jnp.zeros_like(acc_ref)

    acc_ref[...] += lax.dot_general(
        w2t_ref[...], dw.astype(jnp.bfloat16),     # (hb, oup)^T . (hb, HW)
        dimension_numbers=(((0,), (0,)), ((), ())),
        preferred_element_type=jnp.float32)

    @pl.when(j == pl.num_programs(1) - 1)
    def _():
        y = acc_ref[...] + b2_ref[...]
        if use_res:
            y = y + x                              # stride==1, oup==Cin
        o_ref[0] = y.astype(o_ref.dtype)


def _pick_hidden_block(hidden, hw):
    """Largest hidden-channel block whose ~8 live (hb, HW) f32 temporaries stay
    around 8 MiB, chosen as a divisor of `hidden` (multiple of 16 preferred)."""
    cap = (8 * 1024 * 1024) // (hw * 4 * 8)
    cap = max(16, min(64, (cap // 16) * 16))
    if hidden <= cap:
        return hidden
    for d in range(cap, 0, -16):
        if hidden % d == 0:
            return d
    for d in range((cap // 8) * 8, 0, -8):
        if hidden % d == 0:
            return d
    return hidden


def inverted_residual(x_nchw, params, *, stride, use_res, has_expand):
    """Forward pass of MobileNetV2 InvertedResidual. x_nchw: (N, Cin, H, W) f32."""
    N, Cin, H, W = x_nchw.shape
    w1, b1, wdw, bdw, w2, b2 = params
    hidden = wdw.shape[0]
    oup = w2.shape[0]
    HW = H * W
    mxu_expand = bool(has_expand) and Cin > _VPU_EXPAND_MAX_CIN

    x = x_nchw.reshape(N, Cin, HW)                 # free reshape, no transpose
    w2t = jnp.transpose(w2)                        # (hidden, oup) bf16

    # Boundary masks for the depthwise taps (precomputed, tiny).
    xpos = jnp.arange(HW, dtype=jnp.int32) % W
    ypos = jnp.arange(HW, dtype=jnp.int32) // W
    masks = jnp.stack([xpos != W - 1, xpos != 0,
                       ypos != 0, ypos != H - 1]).astype(jnp.float32)  # (4, HW)

    hb = _pick_hidden_block(hidden, HW) if has_expand else hidden
    n_hb = hidden // hb

    operands = [x]
    in_specs = [pl.BlockSpec((1, Cin, HW), lambda n, j: (n, 0, 0))]
    if has_expand:
        operands += [w1, b1]
        in_specs += [pl.BlockSpec((hb, Cin), lambda n, j: (j, 0)),
                     pl.BlockSpec((hb, 1), lambda n, j: (j, 0))]
    operands += [wdw, bdw, w2t, b2, masks]
    in_specs += [pl.BlockSpec((hb, 9), lambda n, j: (j, 0)),
                 pl.BlockSpec((hb, 1), lambda n, j: (j, 0)),
                 pl.BlockSpec((hb, oup), lambda n, j: (j, 0)),
                 pl.BlockSpec((oup, 1), lambda n, j: (0, 0)),
                 pl.BlockSpec((4, HW), lambda n, j: (0, 0))]

    kernel = functools.partial(_inverted_residual_kernel,
                               has_expand=has_expand, mxu_expand=mxu_expand,
                               use_res=use_res, W=W)

    flops = N * HW * ((2 * Cin * hidden if has_expand else 0)
                      + 22 * hidden + 2 * hidden * oup)
    bytes_accessed = (N * oup * HW * 4
                      + sum(int(op.size) * op.dtype.itemsize for op in operands))

    out = pl.pallas_call(
        kernel,
        out_shape=jax.ShapeDtypeStruct((N, oup, HW), x.dtype),
        grid=(N, n_hb),
        in_specs=in_specs,
        out_specs=pl.BlockSpec((1, oup, HW), lambda n, j: (n, 0, 0)),
        scratch_shapes=[pltpu.VMEM((oup, HW), jnp.float32)],
        compiler_params=pltpu.CompilerParams(
            dimension_semantics=("parallel", "arbitrary"),
            vmem_limit_bytes=32 * 1024 * 1024),
        cost_estimate=pl.CostEstimate(flops=int(flops), transcendentals=0,
                                      bytes_accessed=int(bytes_accessed)),
    )(*operands)

    y = out.reshape(N, oup, H, W)
    if stride == 2:
        # TODO(synk): fold the stride-2 subsample into the kernel (e.g. a
        # sublane-strided copy through a (hb, H, W) scratch view before the
        # project conv) to also recover the 4x project-conv FLOPs; the
        # wrapper-side strided slice already removes the old dense (HW, HWout)
        # selection matmul and its VMEM-busting operand.
        y = y[:, :, ::2, ::2]
    return y


def make_params(key, inp, oup, expand_ratio, dtype=jnp.float32):
    """Deterministic synthetic weights; BatchNorm (eval) folded into the convs.
    1x1-conv weights are stored bf16 (MXU operands); biases / depthwise stay f32."""
    hidden = int(round(inp * expand_ratio))
    has_expand = expand_ratio != 1
    eps = 1e-5
    ks = list(jax.random.split(key, 15))

    def bn_fold(kg, kb, km, kv, c):
        gamma = 1.0 + 0.1 * jax.random.normal(kg, (c,), dtype)
        beta = 0.1 * jax.random.normal(kb, (c,), dtype)
        mean = 0.1 * jax.random.normal(km, (c,), dtype)
        var = jnp.abs(jax.random.normal(kv, (c,), dtype)) + 0.5
        scale = gamma / jnp.sqrt(var + eps)
        bias = beta - mean * scale
        return scale, bias

    # expand 1x1 conv: PyTorch weight (hidden, inp, 1, 1)
    w1_raw = 0.3 * jax.random.normal(ks[0], (hidden, inp), dtype)
    s1, bb1 = bn_fold(ks[1], ks[2], ks[3], ks[4], hidden)
    w1 = (w1_raw * s1[:, None]).astype(jnp.bfloat16)          # (hidden, inp) bf16
    b1 = bb1.reshape(hidden, 1)

    # depthwise 3x3 conv: PyTorch weight (hidden, 1, 3, 3)
    wdw_raw = 0.3 * jax.random.normal(ks[5], (hidden, 3, 3), dtype)
    s2, bb2 = bn_fold(ks[6], ks[7], ks[8], ks[9], hidden)
    wdw = (wdw_raw * s2[:, None, None]).reshape(hidden, 9)    # f32 (VPU stage)
    bdw = bb2.reshape(hidden, 1)

    # project 1x1 conv: PyTorch weight (oup, hidden, 1, 1)
    w2_raw = 0.3 * jax.random.normal(ks[10], (oup, hidden), dtype)
    s3, bb3 = bn_fold(ks[11], ks[12], ks[13], ks[14], oup)
    w2 = (w2_raw * s3[:, None]).astype(jnp.bfloat16)          # (oup, hidden) bf16
    b2 = bb3.reshape(oup, 1)

    return (w1, b1, wdw, bdw, w2, b2), has_expand


def ref_forward(x_nchw, params, *, stride, use_res, has_expand, mxu_expand):
    """Pure-JAX (lax.conv) reference with the same folded bf16 weights, NCHW in/out.
    Mirrors the kernel's precision policy (bf16 operands at the 1x1-conv MXU
    boundaries, f32 accumulation) so the comparison tolerance stays tight."""
    w1, b1, wdw, bdw, w2, b2 = params
    hidden = wdw.shape[0]
    f32 = jnp.float32
    x = jnp.transpose(x_nchw, (0, 2, 3, 1))            # NHWC
    dn = ('NHWC', 'HWIO', 'NHWC')
    h = x
    if has_expand:
        xin = x.astype(jnp.bfloat16).astype(f32) if mxu_expand else x
        k1 = jnp.transpose(w1.astype(f32)).reshape(1, 1, w1.shape[1], w1.shape[0])
        h = lax.conv_general_dilated(xin, k1, (1, 1), ((0, 0), (0, 0)),
                                     dimension_numbers=dn)
        h = _relu6(h + b1.reshape(1, 1, 1, -1))
    kd = jnp.transpose(wdw).reshape(3, 3, 1, hidden)
    d = lax.conv_general_dilated(h, kd, (stride, stride), ((1, 1), (1, 1)),
                                 feature_group_count=hidden,
                                 dimension_numbers=dn)
    d = _relu6(d + bdw.reshape(1, 1, 1, -1))
    d = d.astype(jnp.bfloat16).astype(f32)              # mirror kernel's MXU cast
    k2 = jnp.transpose(w2.astype(f32)).reshape(1, 1, w2.shape[1], w2.shape[0])
    y = lax.conv_general_dilated(d, k2, (1, 1), ((0, 0), (0, 0)),
                                 dimension_numbers=dn)
    y = y + b2.reshape(1, 1, 1, -1)
    if use_res:
        y = y + x
    return jnp.transpose(y, (0, 3, 1, 2))               # back to NCHW


if __name__ == "__main__":
    key = jax.random.PRNGKey(0)
    k = jax.random.split(key, 8)

    def run_and_check(tag, *, N, inp, oup, H, W, stride, expand_ratio, kx, kp):
        use_res = (stride == 1) and (inp == oup)
        x = jax.random.normal(kx, (N, inp, H, W), jnp.float32)
        params, has_expand = make_params(kp, inp, oup, expand_ratio)
        out = inverted_residual(x, params, stride=stride, use_res=use_res,
                                has_expand=has_expand)
        out = jax.block_until_ready(out)
        mxu_expand = has_expand and inp > _VPU_EXPAND_MAX_CIN
        ref = ref_forward(x, params, stride=stride, use_res=use_res,
                          has_expand=has_expand, mxu_expand=mxu_expand)
        Hout = (H - 1) // stride + 1
        Wout = (W - 1) // stride + 1
        assert out.shape == (N, oup, Hout, Wout), (tag, out.shape)
        err = float(jnp.max(jnp.abs(out - ref)))
        # bf16 MXU operands with f32 accumulation -> looser than pure-f32 5e-4.
        assert jnp.allclose(out, ref, atol=2e-2, rtol=2e-2), (tag, err)

    # Primary config: InvertedResidual(inp=4, oup=4, stride=1, expand_ratio=4)
    # (VPU expand path, residual, single hidden block).
    run_and_check("s1_expand_small", N=2, inp=4, oup=4, H=16, W=16,
                  stride=1, expand_ratio=4, kx=k[0], kp=k[1])
    # Stride-2 block (no residual), MXU expand path, hidden=144 -> 3 hidden blocks.
    run_and_check("s2_expand_mxu", N=2, inp=24, oup=32, H=16, W=16,
                  stride=2, expand_ratio=6, kx=k[2], kp=k[3])
    # expand_ratio == 1 (no expand conv) with residual.
    run_and_check("s1_noexpand", N=2, inp=8, oup=8, H=16, W=16,
                  stride=1, expand_ratio=1, kx=k[4], kp=k[5])
    # Residual + multi-block project accumulation (hidden=192 -> hb=64, 3 blocks).
    run_and_check("s1_expand_acc", N=2, inp=32, oup=32, H=16, W=16,
                  stride=1, expand_ratio=6, kx=k[6], kp=k[7])

    print("KERNEL_OK")
</pallas_src>

<mosaic_0001>
module attributes {stable_mosaic.version = 11 : i64} {
  func.func @_inverted_residual_kernel(%arg0: i32, %arg1: i32, %arg2: memref<1x4x256xf32, #tpu.memory_space<vmem>>, %arg3: memref<16x4xbf16, #tpu.memory_space<vmem>>, %arg4: memref<16x1xf32, #tpu.memory_space<vmem>>, %arg5: memref<16x9xf32, #tpu.memory_space<vmem>>, %arg6: memref<16x1xf32, #tpu.memory_space<vmem>>, %arg7: memref<16x4xbf16, #tpu.memory_space<vmem>>, %arg8: memref<4x1xf32, #tpu.memory_space<vmem>>, %arg9: memref<4x256xf32, #tpu.memory_space<vmem>>, %arg10: memref<1x4x256xf32, #tpu.memory_space<vmem>>, %arg11: memref<4x256xf32, #tpu.memory_space<vmem>>) attributes {dimension_semantics = [#tpu.dimension_semantics<parallel>, #tpu.dimension_semantics<arbitrary>], iteration_bounds = array<i64: 2, 1>, scalar_prefetch = 0 : i64, scratch_operands = 1 : i64, tpu.core_type = #tpu.core_type<tc>, window_params = [{transform_indices = @transform_0, window_bounds = array<i64: 1, 4, 256>}, {transform_indices = @transform_1, window_bounds = array<i64: 16, 4>}, {transform_indices = @transform_2, window_bounds = array<i64: 16, 1>}, {transform_indices = @transform_3, window_bounds = array<i64: 16, 9>}, {transform_indices = @transform_4, window_bounds = array<i64: 16, 1>}, {transform_indices = @transform_5, window_bounds = array<i64: 16, 4>}, {pipeline_mode = #tpu.pipeline_mode<synchronous>, transform_indices = @transform_6, window_bounds = array<i64: 4, 1>}, {pipeline_mode = #tpu.pipeline_mode<synchronous>, transform_indices = @transform_7, window_bounds = array<i64: 4, 256>}, {transform_indices = @transform_8, window_bounds = array<i64: 1, 4, 256>}]} {
    %c0 = arith.constant 0 : index
    %c0_0 = arith.constant 0 : index
    %c0_1 = arith.constant 0 : index
    %0 = vector.load %arg2[%c0, %c0_0, %c0_1] : memref<1x4x256xf32, #tpu.memory_space<vmem>>, vector<1x4x256xf32>
    %1 = vector.shape_cast %0 : vector<1x4x256xf32> to vector<4x256xf32>
    %c0_2 = arith.constant 0 : index
    %c0_3 = arith.constant 0 : index
    %2 = vector.load %arg3[%c0_2, %c0_3] : memref<16x4xbf16, #tpu.memory_space<vmem>>, vector<16x4xbf16>
    %3 = arith.extf %2 : vector<16x4xbf16> to vector<16x4xf32>
    %4 = vector.extract_strided_slice %1 {offsets = [0, 0], sizes = [1, 256], strides = [1, 1]} : vector<4x256xf32> to vector<1x256xf32>
    %5 = vector.extract_strided_slice %3 {offsets = [0, 0], sizes = [16, 1], strides = [1, 1]} : vector<16x4xf32> to vector<16x1xf32>
    %6 = vector.broadcast %4 : vector<1x256xf32> to vector<16x256xf32>
    %7 = vector.broadcast %5 : vector<16x1xf32> to vector<16x256xf32>
    %8 = arith.mulf %6, %7 : vector<16x256xf32>
    %9 = vector.extract_strided_slice %1 {offsets = [1, 0], sizes = [1, 256], strides = [1, 1]} : vector<4x256xf32> to vector<1x256xf32>
    %10 = vector.extract_strided_slice %3 {offsets = [0, 1], sizes = [16, 1], strides = [1, 1]} : vector<16x4xf32> to vector<16x1xf32>
    %11 = vector.broadcast %9 : vector<1x256xf32> to vector<16x256xf32>
    %12 = vector.broadcast %10 : vector<16x1xf32> to vector<16x256xf32>
    %13 = arith.mulf %11, %12 : vector<16x256xf32>
    %14 = arith.addf %8, %13 : vector<16x256xf32>
    %15 = vector.extract_strided_slice %1 {offsets = [2, 0], sizes = [1, 256], strides = [1, 1]} : vector<4x256xf32> to vector<1x256xf32>
    %16 = vector.extract_strided_slice %3 {offsets = [0, 2], sizes = [16, 1], strides = [1, 1]} : vector<16x4xf32> to vector<16x1xf32>
    %17 = vector.broadcast %15 : vector<1x256xf32> to vector<16x256xf32>
    %18 = vector.broadcast %16 : vector<16x1xf32> to vector<16x256xf32>
    %19 = arith.mulf %17, %18 : vector<16x256xf32>
    %20 = arith.addf %14, %19 : vector<16x256xf32>
    %21 = vector.extract_strided_slice %1 {offsets = [3, 0], sizes = [1, 256], strides = [1, 1]} : vector<4x256xf32> to vector<1x256xf32>
    %22 = vector.extract_strided_slice %3 {offsets = [0, 3], sizes = [16, 1], strides = [1, 1]} : vector<16x4xf32> to vector<16x1xf32>
    %23 = vector.broadcast %21 : vector<1x256xf32> to vector<16x256xf32>
    %24 = vector.broadcast %22 : vector<16x1xf32> to vector<16x256xf32>
    %25 = arith.mulf %23, %24 : vector<16x256xf32>
    %26 = arith.addf %20, %25 : vector<16x256xf32>
    %c0_4 = arith.constant 0 : index
    %c0_5 = arith.constant 0 : index
    %27 = vector.load %arg4[%c0_4, %c0_5] : memref<16x1xf32, #tpu.memory_space<vmem>>, vector<16x1xf32>
    %28 = vector.broadcast %27 : vector<16x1xf32> to vector<16x256xf32>
    %29 = arith.addf %26, %28 : vector<16x256xf32>
    %cst = arith.constant 0.000000e+00 : f32
    %30 = vector.broadcast %cst : f32 to vector<16x256xf32>
    %31 = arith.maximumf %29, %30 : vector<16x256xf32>
    %cst_6 = arith.constant 6.000000e+00 : f32
    %32 = vector.broadcast %cst_6 : f32 to vector<16x256xf32>
    %33 = arith.minimumf %31, %32 : vector<16x256xf32>
    %c0_7 = arith.constant 0 : index
    %c0_8 = arith.constant 0 : index
    %34 = vector.load %arg9[%c0_7, %c0_8] : memref<4x256xf32, #tpu.memory_space<vmem>>, vector<1x256xf32>
    %c1 = arith.constant 1 : index
    %c0_9 = arith.constant 0 : index
    %35 = vector.load %arg9[%c1, %c0_9] : memref<4x256xf32, #tpu.memory_space<vmem>>, vector<1x256xf32>
    %c2 = arith.constant 2 : index
    %c0_10 = arith.constant 0 : index
    %36 = vector.load %arg9[%c2, %c0_10] : memref<4x256xf32, #tpu.memory_space<vmem>>, vector<1x256xf32>
    %c3 = arith.constant 3 : index
    %c0_11 = arith.constant 0 : index
    %37 = vector.load %arg9[%c3, %c0_11] : memref<4x256xf32, #tpu.memory_space<vmem>>, vector<1x256xf32>
    %38 = vector.broadcast %34 : vector<1x256xf32> to vector<16x256xf32>
    %39 = arith.mulf %33, %38 : vector<16x256xf32>
    %40 = vector.broadcast %35 : vector<1x256xf32> to vector<16x256xf32>
    %41 = arith.mulf %33, %40 : vector<16x256xf32>
    %c0_12 = arith.constant 0 : index
    %c0_13 = arith.constant 0 : index
    %42 = vector.load %arg5[%c0_12, %c0_13] : memref<16x9xf32, #tpu.memory_space<vmem>>, vector<16x9xf32>
    %43 = vector.extract_strided_slice %42 {offsets = [0, 4], sizes = [16, 1], strides = [1, 1]} : vector<16x9xf32> to vector<16x1xf32>
    %44 = vector.broadcast %43 : vector<16x1xf32> to vector<16x256xf32>
    %45 = arith.mulf %33, %44 : vector<16x256xf32>
    %c1_i32 = arith.constant 1 : i32
    %46 = tpu.dynamic_rotate %39 by %c1_i32 dim 1 : vector<16x256xf32>, i32 -> vector<16x256xf32>
    %47 = vector.extract_strided_slice %42 {offsets = [0, 3], sizes = [16, 1], strides = [1, 1]} : vector<16x9xf32> to vector<16x1xf32>
    %48 = vector.broadcast %47 : vector<16x1xf32> to vector<16x256xf32>
    %49 = arith.mulf %46, %48 : vector<16x256xf32>
    %50 = arith.addf %45, %49 : vector<16x256xf32>
    %c255_i32 = arith.constant 255 : i32
    %51 = tpu.dynamic_rotate %41 by %c255_i32 dim 1 : vector<16x256xf32>, i32 -> vector<16x256xf32>
    %52 = vector.extract_strided_slice %42 {offsets = [0, 5], sizes = [16, 1], strides = [1, 1]} : vector<16x9xf32> to vector<16x1xf32>
    %53 = vector.broadcast %52 : vector<16x1xf32> to vector<16x256xf32>
    %54 = arith.mulf %51, %53 : vector<16x256xf32>
    %55 = arith.addf %50, %54 : vector<16x256xf32>
    %c17_i32 = arith.constant 17 : i32
    %56 = tpu.dynamic_rotate %39 by %c17_i32 dim 1 : vector<16x256xf32>, i32 -> vector<16x256xf32>
    %57 = vector.extract_strided_slice %42 {offsets = [0, 0], sizes = [16, 1], strides = [1, 1]} : vector<16x9xf32> to vector<16x1xf32>
    %58 = vector.broadcast %57 : vector<16x1xf32> to vector<16x256xf32>
    %59 = arith.mulf %56, %58 : vector<16x256xf32>
    %c16_i32 = arith.constant 16 : i32
    %60 = tpu.dynamic_rotate %33 by %c16_i32 dim 1 : vector<16x256xf32>, i32 -> vector<16x256xf32>
    %61 = vector.extract_strided_slice %42 {offsets = [0, 1], sizes = [16, 1], strides = [1, 1]} : vector<16x9xf32> to vector<16x1xf32>
    %62 = vector.broadcast %61 : vector<16x1xf32> to vector<16x256xf32>
    %63 = arith.mulf %60, %62 : vector<16x256xf32>
    %64 = arith.addf %59, %63 : vector<16x256xf32>
    %c15_i32 = arith.constant 15 : i32
    %65 = tpu.dynamic_rotate %41 by %c15_i32 dim 1 : vector<16x256xf32>, i32 -> vector<16x256xf32>
    %66 = vector.extract_strided_slice %42 {offsets = [0, 2], sizes = [16, 1], strides = [1, 1]} : vector<16x9xf32> to vector<16x1xf32>
    %67 = vector.broadcast %66 : vector<16x1xf32> to vector<16x256xf32>
    %68 = arith.mulf %65, %67 : vector<16x256xf32>
    %69 = arith.addf %64, %68 : vector<16x256xf32>
    %c241_i32 = arith.constant 241 : i32
    %70 = tpu.dynamic_rotate %39 by %c241_i32 dim 1 : vector<16x256xf32>, i32 -> vector<16x256xf32>
    %71 = vector.extract_strided_slice %42 {offsets = [0, 6], sizes = [16, 1], strides = [1, 1]} : vector<16x9xf32> to vector<16x1xf32>
    %72 = vector.broadcast %71 : vector<16x1xf32> to vector<16x256xf32>
    %73 = arith.mulf %70, %72 : vector<16x256xf32>
    %c240_i32 = arith.constant 240 : i32
    %74 = tpu.dynamic_rotate %33 by %c240_i32 dim 1 : vector<16x256xf32>, i32 -> vector<16x256xf32>
    %75 = vector.extract_strided_slice %42 {offsets = [0, 7], sizes = [16, 1], strides = [1, 1]} : vector<16x9xf32> to vector<16x1xf32>
    %76 = vector.broadcast %75 : vector<16x1xf32> to vector<16x256xf32>
    %77 = arith.mulf %74, %76 : vector<16x256xf32>
    %78 = arith.addf %73, %77 : vector<16x256xf32>
    %c239_i32 = arith.constant 239 : i32
    %79 = tpu.dynamic_rotate %41 by %c239_i32 dim 1 : vector<16x256xf32>, i32 -> vector<16x256xf32>
    %80 = vector.extract_strided_slice %42 {offsets = [0, 8], sizes = [16, 1], strides = [1, 1]} : vector<16x9xf32> to vector<16x1xf32>
    %81 = vector.broadcast %80 : vector<16x1xf32> to vector<16x256xf32>
    %82 = arith.mulf %79, %81 : vector<16x256xf32>
    %83 = arith.addf %78, %82 : vector<16x256xf32>
    %84 = vector.broadcast %36 : vector<1x256xf32> to vector<16x256xf32>
    %85 = arith.mulf %69, %84 : vector<16x256xf32>
    %86 = arith.addf %55, %85 : vector<16x256xf32>
    %87 = vector.broadcast %37 : vector<1x256xf32> to vector<16x256xf32>
    %88 = arith.mulf %83, %87 : vector<16x256xf32>
    %89 = arith.addf %86, %88 : vector<16x256xf32>
    %c0_14 = arith.constant 0 : index
    %c0_15 = arith.constant 0 : index
    %90 = vector.load %arg6[%c0_14, %c0_15] : memref<16x1xf32, #tpu.memory_space<vmem>>, vector<16x1xf32>
    %91 = vector.broadcast %90 : vector<16x1xf32> to vector<16x256xf32>
    %92 = arith.addf %89, %91 : vector<16x256xf32>
    %cst_16 = arith.constant 0.000000e+00 : f32
    %93 = vector.broadcast %cst_16 : f32 to vector<16x256xf32>
    %94 = arith.maximumf %92, %93 : vector<16x256xf32>
    %cst_17 = arith.constant 6.000000e+00 : f32
    %95 = vector.broadcast %cst_17 : f32 to vector<16x256xf32>
    %96 = arith.minimumf %94, %95 : vector<16x256xf32>
    %c0_i32 = arith.constant 0 : i32
    %97 = arith.cmpi eq, %arg1, %c0_i32 : i32
    %98 = arith.extui %97 : i1 to i32
    %c0_i32_18 = arith.constant 0 : i32
    %99 = arith.cmpi ne, %98, %c0_i32_18 : i32
    scf.if %99 {
      %cst_28 = arith.constant 0.000000e+00 : f32
      %109 = vector.broadcast %cst_28 : f32 to vector<4x256xf32>
      %c0_29 = arith.constant 0 : index
      %c0_30 = arith.constant 0 : index
      %110 = vector.load %arg11[%c0_29, %c0_30] : memref<4x256xf32, #tpu.memory_space<vmem>>, vector<4x256xf32>
      tpu.vector_store %arg11[%c0_29, %c0_30], %109 {strides = array<i32>} : memref<4x256xf32, #tpu.memory_space<vmem>>, vector<4x256xf32>,
    } else {
    }
    %c0_19 = arith.constant 0 : index
    %c0_20 = arith.constant 0 : index
    %100 = vector.load %arg11[%c0_19, %c0_20] : memref<4x256xf32, #tpu.memory_space<vmem>>, vector<4x256xf32>
    %c0_21 = arith.constant 0 : index
    %c0_22 = arith.constant 0 : index
    %101 = vector.load %arg7[%c0_21, %c0_22] : memref<16x4xbf16, #tpu.memory_space<vmem>>, vector<16x4xbf16>
    %102 = arith.truncf %96 : vector<16x256xf32> to vector<16x256xbf16>
    %cst_23 = arith.constant dense<0.000000e+00> : vector<4x256xf32>
    %103 = tpu.matmul %101, %102, %cst_23 {dimension_numbers = #tpu.dot_dimension_numbers<[0], [0], [1], [1], [0, 1, 1, 1], [], []>} : vector<16x4xbf16>, vector<16x256xbf16>, vector<4x256xf32> -> vector<4x256xf32>
    %104 = arith.addf %100, %103 : vector<4x256xf32>
    %c0_24 = arith.constant 0 : index
    %c0_25 = arith.constant 0 : index
    %105 = vector.load %arg11[%c0_24, %c0_25] : memref<4x256xf32, #tpu.memory_space<vmem>>, vector<4x256xf32>
    tpu.vector_store %arg11[%c0_24, %c0_25], %104 {strides = array<i32>} : memref<4x256xf32, #tpu.memory_space<vmem>>, vector<4x256xf32>,
    %c0_i32_26 = arith.constant 0 : i32
    %106 = arith.cmpi eq, %arg1, %c0_i32_26 : i32
    %107 = arith.extui %106 : i1 to i32
    %c0_i32_27 = arith.constant 0 : i32
    %108 = arith.cmpi ne, %107, %c0_i32_27 : i32
    scf.if %108 {
      %c0_28 = arith.constant 0 : index
      %c0_29 = arith.constant 0 : index
      %109 = vector.load %arg11[%c0_28, %c0_29] : memref<4x256xf32, #tpu.memory_space<vmem>>, vector<4x256xf32>
      %c0_30 = arith.constant 0 : index
      %c0_31 = arith.constant 0 : index
      %110 = vector.load %arg8[%c0_30, %c0_31] : memref<4x1xf32, #tpu.memory_space<vmem>>, vector<4x1xf32>
      %111 = vector.broadcast %110 : vector<4x1xf32> to vector<4x256xf32>
      %112 = arith.addf %109, %111 : vector<4x256xf32>
      %113 = arith.addf %112, %1 : vector<4x256xf32>
      %c0_32 = arith.constant 0 : index
      %c0_33 = arith.constant 0 : index
      %c0_34 = arith.constant 0 : index
      %114 = vector.load %arg10[%c0_32, %c0_33, %c0_34] : memref<1x4x256xf32, #tpu.memory_space<vmem>>, vector<1x4x256xf32>
      %115 = vector.shape_cast %114 : vector<1x4x256xf32> to vector<4x256xf32>
      %116 = vector.shape_cast %113 : vector<4x256xf32> to vector<1x4x256xf32>
      tpu.vector_store %arg10[%c0_32, %c0_33, %c0_34], %116 {strides = array<i32>} : memref<1x4x256xf32, #tpu.memory_space<vmem>>, vector<1x4x256xf32>,
    } else {
    }
    return
  }
  func.func @transform_0(%arg0: i32, %arg1: i32) -> (i32, i32, i32) {
    %c0_i32 = arith.constant 0 : i32
    %c0_i32_0 = arith.constant 0 : i32
    %c0_i32_1 = arith.constant 0 : i32
    return %arg0, %c0_i32, %c0_i32_0 : i32, i32, i32
  }
  func.func @transform_1(%arg0: i32, %arg1: i32) -> (i32, i32) {
    %c0_i32 = arith.constant 0 : i32
    %c0_i32_0 = arith.constant 0 : i32
    return %arg1, %c0_i32 : i32, i32
  }
  func.func @transform_2(%arg0: i32, %arg1: i32) -> (i32, i32) {
    %c0_i32 = arith.constant 0 : i32
    %c0_i32_0 = arith.constant 0 : i32
    return %arg1, %c0_i32 : i32, i32
  }
  func.func @transform_3(%arg0: i32, %arg1: i32) -> (i32, i32) {
    %c0_i32 = arith.constant 0 : i32
    %c0_i32_0 = arith.constant 0 : i32
    return %arg1, %c0_i32 : i32, i32
  }
  func.func @transform_4(%arg0: i32, %arg1: i32) -> (i32, i32) {
    %c0_i32 = arith.constant 0 : i32
    %c0_i32_0 = arith.constant 0 : i32
    return %arg1, %c0_i32 : i32, i32
  }
  func.func @transform_5(%arg0: i32, %arg1: i32) -> (i32, i32) {
    %c0_i32 = arith.constant 0 : i32
    %c0_i32_0 = arith.constant 0 : i32
    return %arg1, %c0_i32 : i32, i32
  }
  func.func @transform_6(%arg0: i32, %arg1: i32) -> (i32, i32) {
    %c0_i32 = arith.constant 0 : i32
    %c0_i32_0 = arith.constant 0 : i32
    %c0_i32_1 = arith.constant 0 : i32
    return %c0_i32, %c0_i32_0 : i32, i32
  }
  func.func @transform_7(%arg0: i32, %arg1: i32) -> (i32, i32) {
    %c0_i32 = arith.constant 0 : i32
    %c0_i32_0 = arith.constant 0 : i32
    %c0_i32_1 = arith.constant 0 : i32
    return %c0_i32, %c0_i32_0 : i32, i32
  }
  func.func @transform_8(%arg0: i32, %arg1: i32) -> (i32, i32, i32) {
    %c0_i32 = arith.constant 0 : i32
    %c0_i32_0 = arith.constant 0 : i32
    %c0_i32_1 = arith.constant 0 : i32
    return %arg0, %c0_i32, %c0_i32_0 : i32, i32, i32
  }
}

</mosaic_0001>

<llo_original>
// kernel: tpu_custom_call.1
$region0: #{tpu_custom_call.1}
  #allocation0 [shape = 'u32[]', space=smem, size = 0x4, offset = 0x4, fixed_abs, tag = 'smem constant byte address 0x4 - core index']
  #allocation1 [shape = 'u32[144,128]{1,0:T(1,128)}', space=vmem, size = 0x12000, scoped, tag = 'internal scratch']
  #allocation2 [shape = 'f32[4,256]{1,0:T(4,128)}', space=vmem, size = 0x1000, scoped, tag = 'scratch operand']
  %s0 = inlined_call_operand.vmem [shape: f32[2,4,256], index: 0, kind: input, shape index: {}]
  %s1 = inlined_call_operand.vmem [shape: bf16[16,4], index: 1, kind: input, shape index: {}]
  %s2 = inlined_call_operand.vmem [shape: f32[16,1], index: 2, kind: input, shape index: {}]
  %s3 = inlined_call_operand.vmem [shape: f32[16,9], index: 3, kind: input, shape index: {}]
  %s4 = inlined_call_operand.vmem [shape: f32[16,1], index: 4, kind: input, shape index: {}]
  %s5 = inlined_call_operand.vmem [shape: bf16[16,4], index: 5, kind: input, shape index: {}]
  %s6 = inlined_call_operand.vmem [shape: f32[4,1], index: 6, kind: input, shape index: {}]
  %s7 = inlined_call_operand.vmem [shape: f32[4,256], index: 7, kind: input, shape index: {}]
  %s8 = inlined_call_operand.hbm [shape: f32[2,4,256], index: 8, kind: output, shape index: {}]
  %s9 = sld [smem:[#allocation0]]
  $region73: #{tpu_custom_call.1} parent=0
    _
  %s11 = ssub.s32 1, %s9
  %s12 = scalar_select 0, %s11, %s9
  $region1: #{tpu_custom_call.1} parent=0
    #allocation3 [shape = 'u8[8192]{0}', space=vmem, size = 0x2000, scoped, tag = 'output window, operand 0']
    #allocation4 [shape = 's32[2]{0}', space=sflag, size = 0x8, scoped, tag = 'scoped memory for tpu_custom_call.1']
    %13 = vsyncpa [#allocation4], 0
    %s14 = scalar_lea.sflag [#allocation4], 1
    %15 = vsyncpa %s14, 0
    loop: start=0, step=1, limit=4
    $region2: #{tpu_custom_call.1} parent=1 // loop_pre_header
      _
    $region3: #{tpu_custom_call.1} parent=1 // loop_header
      %s17 = sphi 0, %s21
      %p18 = scmp.ge.s32.totalorder %s17, 4
      %s24 = sphi 0, %s36
      %s25 = sphi 0, %s32
      %s26 = sphi 0, %s24
      %s27 = sphi 0, %s25
      %s28 = sphi 0, %s26
      %s29 = sphi 0, %s27
      %s39 = sphi 0, %s41
      %s42 = sphi 0, %s39
      %s43 = sphi 0, %s42
      %s59 = sphi 0, %s43
      %s65 = sphi 0, %s67
      %s68 = sphi 0, %s65
      %s69 = sphi 0, %s68
      %s85 = sphi 0, %s69
      %s91 = sphi 0, %s93
      %s94 = sphi 0, %s91
      %s95 = sphi 0, %s94
      %s111 = sphi 0, %s95
      %s117 = sphi 0, %s119
      %s120 = sphi 0, %s117
      %s121 = sphi 0, %s120
      %s137 = sphi 0, %s121
      %s143 = sphi 0, %s145
      %s146 = sphi 0, %s143
      %s147 = sphi 0, %s146
      %s163 = sphi 0, %s147
      %s169 = sphi 0, %s171
      %s172 = sphi 0, %s169
      %s173 = sphi 0, %s172
      %s189 = sphi 0, %s173
      %s193 = sphi 0, %s193
      %s195 = sphi 0, %s193
      %s196 = sphi 0, %s195
      %s210 = sphi 0, %s196
      %s214 = sphi 0, %s214
      %s216 = sphi 0, %s214
      %s217 = sphi 0, %s216
      %s231 = sphi 0, %s217
      %s237 = sphi 0, %s239
      %s240 = sphi 0, %s237
      %s241 = sphi 0, %s240
      %s257 = sphi 0, %s241
    $region4: #{tpu_custom_call.1} parent=1 // loop_header_branch
      %20 = sbr.rel (%p18) target = $region8
    $region5: #{tpu_custom_call.1} parent=1 // loop_body
      %s22 = ssub.s32 %s17, 1
      %s23 = ssub.s32 %s17, 2
      %s30 = sadd.s32 1, %s25
      %p31 = scmp.ge.s32.totalorder %s30, 1
      %s32 = scalar_select %p31, 0, %s30
      %s33 = sadd.s32 1, %s24
      %s34 = scalar_select %p31, %s33, %s24
      %p35 = scmp.ge.s32.totalorder %s34, 2
      %s36 = scalar_select %p35, 0, %s34
      %s37 = ssub.s32 %s24, %s36
      %p38 = scmp.eq.s32.totalorder %s37, 0
      %s40 = sadd.s32 %s39, 1
      %s41 = scalar_select %p38, %s39, %s40
      %p44 = pneg %p38
      %p45 = scmp.eq.s32.totalorder %s17, 1
      %p46 = por %p44, %p45
      %p47 = scmp.ne.s32.totalorder %s39, %s42
      %p48 = scmp.eq.s32.totalorder %s17, 0
      %p49 = por %p47, %p48
      %p50 = scmp.ne.s32.totalorder %s39, %s42
      %p51 = scmp.eq.s32.totalorder %s22, 1
      %p52 = por %p50, %p51
      %p53 = scmp.ne.s32.totalorder %s42, %s43
      %p54 = scmp.eq.s32.totalorder %s22, 0
      %p55 = por %p53, %p54
      %p56 = scmp.ne.s32.totalorder %s42, %s43
      %p57 = scmp.eq.s32.totalorder %s23, 1
      %p58 = por %p56, %p57
      %p60 = scmp.ne.s32.totalorder %s43, %s59
      %p61 = scmp.eq.s32.totalorder %s23, 0
      %p62 = por %p60, %p61
      %s63 = ssub.s32 %s25, %s32
      %p64 = scmp.eq.s32.totalorder %s63, 0
      %s66 = sadd.s32 %s65, 1
      %s67 = scalar_select %p64, %s65, %s66
      %p70 = pneg %p64
      %p71 = scmp.eq.s32.totalorder %s17, 1
      %p72 = por %p70, %p71
      %p73 = scmp.ne.s32.totalorder %s65, %s68
      %p74 = scmp.eq.s32.totalorder %s17, 0
      %p75 = por %p73, %p74
      %p76 = scmp.ne.s32.totalorder %s65, %s68
      %p77 = scmp.eq.s32.totalorder %s22, 1
      %p78 = por %p76, %p77
      %p79 = scmp.ne.s32.totalorder %s68, %s69
      %p80 = scmp.eq.s32.totalorder %s22, 0
      %p81 = por %p79, %p80
      %p82 = scmp.ne.s32.totalorder %s68, %s69
      %p83 = scmp.eq.s32.totalorder %s23, 1
      %p84 = por %p82, %p83
      %p86 = scmp.ne.s32.totalorder %s69, %s85
      %p87 = scmp.eq.s32.totalorder %s23, 0
      %p88 = por %p86, %p87
      %s89 = ssub.s32 %s25, %s32
      %p90 = scmp.eq.s32.totalorder %s89, 0
      %s92 = sadd.s32 %s91, 1
      %s93 = scalar_select %p90, %s91, %s92
      %p96 = pneg %p90
      %p97 = scmp.eq.s32.totalorder %s17, 1
      %p98 = por %p96, %p97
      %p99 = scmp.ne.s32.totalorder %s91, %s94
      %p100 = scmp.eq.s32.totalorder %s17, 0
      %p101 = por %p99, %p100
      %p102 = scmp.ne.s32.totalorder %s91, %s94
      %p103 = scmp.eq.s32.totalorder %s22, 1
      %p104 = por %p102, %p103
      %p105 = scmp.ne.s32.totalorder %s94, %s95
      %p106 = scmp.eq.s32.totalorder %s22, 0
      %p107 = por %p105, %p106
      %p108 = scmp.ne.s32.totalorder %s94, %s95
      %p109 = scmp.eq.s32.totalorder %s23, 1
      %p110 = por %p108, %p109
      %p112 = scmp.ne.s32.totalorder %s95, %s111
      %p113 = scmp.eq.s32.totalorder %s23, 0
      %p114 = por %p112, %p113
      %s115 = ssub.s32 %s25, %s32
      %p116 = scmp.eq.s32.totalorder %s115, 0
      %s118 = sadd.s32 %s117, 1
      %s119 = scalar_select %p116, %s117, %s118
      %p122 = pneg %p116
      %p123 = scmp.eq.s32.totalorder %s17, 1
      %p124 = por %p122, %p123
      %p125 = scmp.ne.s32.totalorder %s117, %s120
      %p126 = scmp.eq.s32.totalorder %s17, 0
      %p127 = por %p125, %p126
      %p128 = scmp.ne.s32.totalorder %s117, %s120
      %p129 = scmp.eq.s32.totalorder %s22, 1
      %p130 = por %p128, %p129
      %p131 = scmp.ne.s32.totalorder %s120, %s121
      %p132 = scmp.eq.s32.totalorder %s22, 0
      %p133 = por %p131, %p132
      %p134 = scmp.ne.s32.totalorder %s120, %s121
      %p135 = scmp.eq.s32.totalorder %s23, 1
      %p136 = por %p134, %p135
      %p138 = scmp.ne.s32.totalorder %s121, %s137
      %p139 = scmp.eq.s32.totalorder %s23, 0
      %p140 = por %p138, %p139
      %s141 = ssub.s32 %s25, %s32
      %p142 = scmp.eq.s32.totalorder %s141, 0
      %s144 = sadd.s32 %s143, 1
      %s145 = scalar_select %p142, %s143, %s144
      %p148 = pneg %p142
      %p149 = scmp.eq.s32.totalorder %s17, 1
      %p150 = por %p148, %p149
      %p151 = scmp.ne.s32.totalorder %s143, %s146
      %p152 = scmp.eq.s32.totalorder %s17, 0
      %p153 = por %p151, %p152
      %p154 = scmp.ne.s32.totalorder %s143, %s146
      %p155 = scmp.eq.s32.totalorder %s22, 1
      %p156 = por %p154, %p155
      %p157 = scmp.ne.s32.totalorder %s146, %s147
      %p158 = scmp.eq.s32.totalorder %s22, 0
      %p159 = por %p157, %p158
      %p160 = scmp.ne.s32.totalorder %s146, %s147
      %p161 = scmp.eq.s32.totalorder %s23, 1
      %p162 = por %p160, %p161
      %p164 = scmp.ne.s32.totalorder %s147, %s163
      %p165 = scmp.eq.s32.totalorder %s23, 0
      %p166 = por %p164, %p165
      %s167 = ssub.s32 %s25, %s32
      %p168 = scmp.eq.s32.totalorder %s167, 0
      %s170 = sadd.s32 %s169, 1
      %s171 = scalar_select %p168, %s169, %s170
      %p174 = pneg %p168
      %p175 = scmp.eq.s32.totalorder %s17, 1
      %p176 = por %p174, %p175
      %p177 = scmp.ne.s32.totalorder %s169, %s172
      %p178 = scmp.eq.s32.totalorder %s17, 0
      %p179 = por %p177, %p178
      %p180 = scmp.ne.s32.totalorder %s169, %s172
      %p181 = scmp.eq.s32.totalorder %s22, 1
      %p182 = por %p180, %p181
      %p183 = scmp.ne.s32.totalorder %s172, %s173
      %p184 = scmp.eq.s32.totalorder %s22, 0
      %p185 = por %p183, %p184
      %p186 = scmp.ne.s32.totalorder %s172, %s173
      %p187 = scmp.eq.s32.totalorder %s23, 1
      %p188 = por %p186, %p187
      %p190 = scmp.ne.s32.totalorder %s173, %s189
      %p191 = scmp.eq.s32.totalorder %s23, 0
      %p192 = por %p190, %p191
      %s194 = sadd.s32 %s193, 1
      %p197 = scmp.eq.s32.totalorder %s17, 1
      %p198 = scmp.ne.s32.totalorder %s193, %s195
      %p199 = scmp.eq.s32.totalorder %s17, 0
      %p200 = por %p198, %p199
      %p201 = scmp.ne.s32.totalorder %s193, %s195
      %p202 = scmp.eq.s32.totalorder %s22, 1
      %p203 = por %p201, %p202
      %p204 = scmp.ne.s32.totalorder %s195, %s196
      %p205 = scmp.eq.s32.totalorder %s22, 0
      %p206 = por %p204, %p205
      %p207 = scmp.ne.s32.totalorder %s195, %s196
      %p208 = scmp.eq.s32.totalorder %s23, 1
      %p209 = por %p207, %p208
      %p211 = scmp.ne.s32.totalorder %s196, %s210
      %p212 = scmp.eq.s32.totalorder %s23, 0
      %p213 = por %p211, %p212
      %s215 = sadd.s32 %s214, 1
      %p218 = scmp.eq.s32.totalorder %s17, 1
      %p219 = scmp.ne.s32.totalorder %s214, %s216
      %p220 = scmp.eq.s32.totalorder %s17, 0
      %p221 = por %p219, %p220
      %p222 = scmp.ne.s32.totalorder %s214, %s216
      %p223 = scmp.eq.s32.totalorder %s22, 1
      %p224 = por %p222, %p223
      %p225 = scmp.ne.s32.totalorder %s216, %s217
      %p226 = scmp.eq.s32.totalorder %s22, 0
      %p227 = por %p225, %p226
      %p228 = scmp.ne.s32.totalorder %s216, %s217
      %p229 = scmp.eq.s32.totalorder %s23, 1
      %p230 = por %p228, %p229
      %p232 = scmp.ne.s32.totalorder %s217, %s231
      %p233 = scmp.eq.s32.totalorder %s23, 0
      %p234 = por %p232, %p233
      %s235 = ssub.s32 %s24, %s36
      %p236 = scmp.eq.s32.totalorder %s235, 0
      %s238 = sadd.s32 %s237, 1
      %s239 = scalar_select %p236, %s237, %s238
      %p242 = pneg %p236
      %p243 = scmp.eq.s32.totalorder %s17, 1
      %p244 = por %p242, %p243
      %p245 = scmp.ne.s32.totalorder %s237, %s240
      %p246 = scmp.eq.s32.totalorder %s17, 0
      %p247 = por %p245, %p246
      %p248 = scmp.ne.s32.totalorder %s237, %s240
      %p249 = scmp.eq.s32.totalorder %s22, 1
      %p250 = por %p248, %p249
      %p251 = scmp.ne.s32.totalorder %s240, %s241
      %p252 = scmp.eq.s32.totalorder %s22, 0
      %p253 = por %p251, %p252
      %p254 = scmp.ne.s32.totalorder %s240, %s241
      %p255 = scmp.eq.s32.totalorder %s23, 1
      %p256 = por %p254, %p255
      %p258 = scmp.ne.s32.totalorder %s241, %s257
      %p259 = scmp.eq.s32.totalorder %s23, 0
      %p260 = por %p258, %p259
      %p261 = scmp.le.s32.totalorder 1, %s17
      %p262 = scmp.lt.s32.totalorder %s17, 3
      %p263 = pnand %p261, %p262
      %p264 = pneg %p263
      // Predicated region
      $region9: #{tpu_custom_call.1} parent=5 // pred_check
        _
      $region10: #{tpu_custom_call.1} parent=5 // pred_check_branch
        %266 = sbr.rel (%p263) target = $region12
      $region11: #{tpu_custom_call.1} parent=5 // pred_region
        %s267 = ssub.s32 %s17, 1
        // Predicated region
        $region13: #{tpu_custom_call.1} parent=11 // pred_check
          %p268 = pneg %p81
        $region14: #{tpu_custom_call.1} parent=11 // pred_check_branch
          %270 = sbr.rel (%p268) target = $region16
        $region15: #{tpu_custom_call.1} parent=11 // pred_region
          %s271 = smul.u32 2, %s27
          %p272 = scmp.lt.s32.totalorder %s271, 1
          %s273 = scalar_select %p272, %s271, 1
          %s274 = smul.addr %s273, 4
          %s275 = scalar_lea.vmem %s1, %s274
          %s276 = smul.u32 2, %s27
        $region16: #{tpu_custom_call.1} parent=11 // pred_fallthru
          _
        // Predicated region
        $region17: #{tpu_custom_call.1} parent=11 // pred_check
          %p277 = pneg %p107
        $region18: #{tpu_custom_call.1} parent=11 // pred_check_branch
          %279 = sbr.rel (%p277) target = $region20
        $region19: #{tpu_custom_call.1} parent=11 // pred_region
          %s280 = smul.u32 2, %s27
          %p281 = scmp.lt.s32.totalorder %s280, 1
          %s282 = scalar_select %p281, %s280, 1
          %s283 = smul.addr %s282, 8
          %s284 = scalar_lea.vmem %s2, %s283
          %s285 = smul.u32 2, %s27
        $region20: #{tpu_custom_call.1} parent=11 // pred_fallthru
          _
        // Predicated region
        $region21: #{tpu_custom_call.1} parent=11 // pred_check
          %p286 = pneg %p133
        $region22: #{tpu_custom_call.1} parent=11 // pred_check_branch
          %288 = sbr.rel (%p286) target = $region24
        $region23: #{tpu_custom_call.1} parent=11 // pred_region
          %s289 = smul.u32 2, %s27
          %p290 = scmp.lt.s32.totalorder %s289, 1
          %s291 = scalar_select %p290, %s289, 1
          %s292 = smul.addr %s291, 8
          %s293 = scalar_lea.vmem %s3, %s292
          %s294 = smul.u32 2, %s27
        $region24: #{tpu_custom_call.1} parent=11 // pred_fallthru
          _
        // Predicated region
        $region25: #{tpu_custom_call.1} parent=11 // pred_check
          %p295 = pneg %p159
        $region26: #{tpu_custom_call.1} parent=11 // pred_check_branch
          %297 = sbr.rel (%p295) target = $region28
        $region27: #{tpu_custom_call.1} parent=11 // pred_region
          %s298 = smul.u32 2, %s27
          %p299 = scmp.lt.s32.totalorder %s298, 1
          %s300 = scalar_select %p299, %s298, 1
          %s301 = smul.addr %s300, 8
          %s302 = scalar_lea.vmem %s4, %s301
          %s303 = smul.u32 2, %s27
        $region28: #{tpu_custom_call.1} parent=11 // pred_fallthru
          _
        // Predicated region
        $region29: #{tpu_custom_call.1} parent=11 // pred_check
          %p304 = pneg %p185
        $region30: #{tpu_custom_call.1} parent=11 // pred_check_branch
          %306 = sbr.rel (%p304) target = $region32
        $region31: #{tpu_custom_call.1} parent=11 // pred_region
          %s307 = smul.u32 2, %s27
          %p308 = scmp.lt.s32.totalorder %s307, 1
          %s309 = scalar_select %p308, %s307, 1
          %s310 = smul.addr %s309, 4
          %s311 = scalar_lea.vmem %s5, %s310
          %s312 = smul.u32 2, %s27
        $region32: #{tpu_custom_call.1} parent=11 // pred_fallthru
          _
        // Predicated region
        $region33: #{tpu_custom_call.1} parent=11 // pred_check
          %p313 = pneg %p206
        $region34: #{tpu_custom_call.1} parent=11 // pred_check_branch
          %315 = sbr.rel (%p313) target = $region36
        $region35: #{tpu_custom_call.1} parent=11 // pred_region
          _
        $region36: #{tpu_custom_call.1} parent=11 // pred_fallthru
          _
        // Predicated region
        $region37: #{tpu_custom_call.1} parent=11 // pred_check
          %p316 = pneg %p227
        $region38: #{tpu_custom_call.1} parent=11 // pred_check_branch
          %318 = sbr.rel (%p316) target = $region40
        $region39: #{tpu_custom_call.1} parent=11 // pred_region
          _
        $region40: #{tpu_custom_call.1} parent=11 // pred_fallthru
          _
      $region12: #{tpu_custom_call.1} parent=5 // pred_fallthru
        _
      %p319 = scmp.lt.s32.totalorder %s17, 2
      // Predicated region
      $region41: #{tpu_custom_call.1} parent=5 // pred_check
        %p320 = pneg %p319
      $region42: #{tpu_custom_call.1} parent=5 // pred_check_branch
        %322 = sbr.rel (%p320) target = $region44
      $region43: #{tpu_custom_call.1} parent=5 // pred_region
        // Predicated region
        $region45: #{tpu_custom_call.1} parent=43 // pred_check
          %p323 = pneg %p49
        $region46: #{tpu_custom_call.1} parent=43 // pred_check_branch
          %325 = sbr.rel (%p323) target = $region48
        $region47: #{tpu_custom_call.1} parent=43 // pred_region
          %p326 = scmp.lt.s32.totalorder %s24, 1
          %s327 = scalar_select %p326, %s24, 1
          %s328 = smul.addr %s327, 2
          %s329 = smul.addr %s328, 4
          %s330 = scalar_lea.vmem %s0, %s329
        $region48: #{tpu_custom_call.1} parent=43 // pred_fallthru
          _
      $region44: #{tpu_custom_call.1} parent=5 // pred_fallthru
        _
      %p331 = scmp.le.s32.totalorder 1, %s17
      %p332 = scmp.lt.s32.totalorder %s17, 3
      %p333 = pnand %p331, %p332
      %p334 = pneg %p333
      // Predicated region
      $region49: #{tpu_custom_call.1} parent=5 // pred_check
        _
      $region50: #{tpu_custom_call.1} parent=5 // pred_check_branch
        %336 = sbr.rel (%p333) target = $region52
      $region51: #{tpu_custom_call.1} parent=5 // pred_region
        %s337 = ssub.s32 %s17, 1
        %p338 = scmp.lt.s32.totalorder %s26, 1
        %s339 = scalar_select %p338, %s26, 1
        %s340 = smul.addr %s339, 2
        %s341 = smul.addr %s340, 4
        %s342 = scalar_lea.vmem %s0, %s341
        %p343 = pneg %p55
        %p344 = pneg %p52
        %s345 = smul.u32 2, %s27
        %p346 = scmp.lt.s32.totalorder %s345, 1
        %s347 = scalar_select %p346, %s345, 1
        %s348 = smul.addr %s347, 4
        %s349 = scalar_lea.vmem %s1, %s348
        %p350 = pneg %p81
        %p351 = pneg %p78
        %s352 = smul.u32 2, %s27
        %p353 = scmp.lt.s32.totalorder %s352, 1
        %s354 = scalar_select %p353, %s352, 1
        %s355 = smul.addr %s354, 8
        %s356 = scalar_lea.vmem %s2, %s355
        %p357 = pneg %p107
        %p358 = pneg %p104
        %s359 = smul.u32 2, %s27
        %p360 = scmp.lt.s32.totalorder %s359, 1
        %s361 = scalar_select %p360, %s359, 1
        %s362 = smul.addr %s361, 8
        %s363 = scalar_lea.vmem %s3, %s362
        %p364 = pneg %p133
        %p365 = pneg %p130
        %s366 = smul.u32 2, %s27
        %p367 = scmp.lt.s32.totalorder %s366, 1
        %s368 = scalar_select %p367, %s366, 1
        %s369 = smul.addr %s368, 8
        %s370 = scalar_lea.vmem %s4, %s369
        %p371 = pneg %p159
        %p372 = pneg %p156
        %s373 = smul.u32 2, %s27
        %p374 = scmp.lt.s32.totalorder %s373, 1
        %s375 = scalar_select %p374, %s373, 1
        %s376 = smul.addr %s375, 4
        %s377 = scalar_lea.vmem %s5, %s376
        %p378 = pneg %p185
        %p379 = pneg %p182
        %p380 = pneg %p206
        %p381 = pneg %p203
        %p382 = pneg %p227
        %p383 = pneg %p224
        %p384 = pneg %p253
        %p385 = pneg %p250
        %s386 = sand.u32 %s240, 1
        %s387 = scalar_lea.sflag [#allocation4], %s386
        %s388 = sand.u32 %s240, 1
        %s389 = smul.addr %s388, 8
        %s390 = scalar_lea.vmem [#allocation3], %s389
        %p391 = scmp.lt.s32.totalorder %s26, 1
        %s392 = scalar_select %p391, %s26, 1
        %s393 = smul.addr %s392, 2
        %s394 = smul.addr %s393, 4
        %s395 = scalar_lea.vmem %s0, %s394
        %s396 = smul.u32 2, %s27
        %p397 = scmp.lt.s32.totalorder %s396, 1
        %s398 = scalar_select %p397, %s396, 1
        %s399 = smul.addr %s398, 4
        %s400 = scalar_lea.vmem %s1, %s399
        %s401 = smul.u32 2, %s27
        %s402 = smul.u32 2, %s27
        %p403 = scmp.lt.s32.totalorder %s402, 1
        %s404 = scalar_select %p403, %s402, 1
        %s405 = smul.addr %s404, 8
        %s406 = scalar_lea.vmem %s2, %s405
        %s407 = smul.u32 2, %s27
        %s408 = smul.u32 2, %s27
        %p409 = scmp.lt.s32.totalorder %s408, 1
        %s410 = scalar_select %p409, %s408, 1
        %s411 = smul.addr %s410, 8
        %s412 = scalar_lea.vmem %s3, %s411
        %s413 = smul.u32 2, %s27
        %s414 = smul.u32 2, %s27
        %p415 = scmp.lt.s32.totalorder %s414, 1
        %s416 = scalar_select %p415, %s414, 1
        %s417 = smul.addr %s416, 8
        %s418 = scalar_lea.vmem %s4, %s417
        %s419 = smul.u32 2, %s27
        %s420 = smul.u32 2, %s27
        %p421 = scmp.lt.s32.totalorder %s420, 1
        %s422 = scalar_select %p421, %s420, 1
        %s423 = smul.addr %s422, 4
        %s424 = scalar_lea.vmem %s5, %s423
        %s425 = smul.u32 2, %s27
        %v427 = vld [vmem:[%s395] sm:$0xff]
        %v428 = vld [vmem:[%s400] sm:$0xf]
        %v429 = vld [vmem:[%s400 + $0x4] sm:$0xf]
        %v430 = vunpack.c.l.bf16 %v428
        %v431 = vunpack.c.l.bf16 %v429
        %v433 = vlaneseq
        %v434 = vshrl.u32 %v433, 7
        %v435 = vsub.s32 0, %v434
        %v436 = vrot.slane %v427, %v435
        %v437 = vlaneseq
        %v438 = vshrl.u32 %v437, 7
        %v439 = vsub.s32 4, %v438
        %v440 = vrot.slane %v427, %v439
        %v443 = vlaneseq
        %v444 = vshrl.u32 %v443, 7
        %v445 = vsub.s32 0, %v444
        %v446 = vrot.slane %v436, %v445
        %v447 = vlaneseq
        %v448 = vshrl.u32 %v447, 7
        %v449 = vsub.s32 0, %v448
        %v450 = vrot.slane %v440, %v449
        %452 = vset.pattern.permute.xlu0 0
        %453 = vperm.xlu0 %452, %v430
        %v454 = vpop.permute.xlu0 %453
        %457 = vset.pattern.permute.xlu0 0
        %458 = vperm.xlu0 %457, %v431
        %v459 = vpop.permute.xlu0 %458
        %v461 = vmul.f32 %v446, %v454
        %v462 = vmul.f32 %v450, %v454
        %v463 = vmul.f32 %v446, %v459
        %v464 = vmul.f32 %v450, %v459
        %v465 = vlaneseq
        %v466 = vshrl.u32 %v465, 7
        %v467 = vsub.s32 1, %v466
        %v468 = vrot.slane %v427, %v467
        %v469 = vlaneseq
        %v470 = vshrl.u32 %v469, 7
        %v471 = vsub.s32 5, %v470
        %v472 = vrot.slane %v427, %v471
        %v475 = vlaneseq
        %v476 = vshrl.u32 %v475, 7
        %v477 = vsub.s32 1, %v476
        %v478 = vrot.slane %v468, %v477
        %v479 = vlaneseq
        %v480 = vshrl.u32 %v479, 7
        %v481 = vsub.s32 1, %v480
        %v482 = vrot.slane %v472, %v481
        %483 = vset.pattern.permute.xlu0 1
        %484 = vperm.xlu0 %483, %v430
        %v485 = vpop.permute.xlu0 %484
        %487 = vset.pattern.permute.xlu0 1
        %488 = vperm.xlu0 %487, %v431
        %v489 = vpop.permute.xlu0 %488
        %v491 = vmul.f32 %v478, %v485
        %v492 = vmul.f32 %v482, %v485
        %v493 = vmul.f32 %v478, %v489
        %v494 = vmul.f32 %v482, %v489
        %v495 = vadd.f32 %v461, %v491
        %v496 = vadd.f32 %v462, %v492
        %v497 = vadd.f32 %v463, %v493
        %v498 = vadd.f32 %v464, %v494
        %v499 = vlaneseq
        %v500 = vshrl.u32 %v499, 7
        %v501 = vsub.s32 2, %v500
        %v502 = vrot.slane %v427, %v501
        %v503 = vlaneseq
        %v504 = vshrl.u32 %v503, 7
        %v505 = vsub.s32 6, %v504
        %v506 = vrot.slane %v427, %v505
        %v509 = vlaneseq
        %v510 = vshrl.u32 %v509, 7
        %v511 = vsub.s32 2, %v510
        %v512 = vrot.slane %v502, %v511
        %v513 = vlaneseq
        %v514 = vshrl.u32 %v513, 7
        %v515 = vsub.s32 2, %v514
        %v516 = vrot.slane %v506, %v515
        %517 = vset.pattern.permute.xlu0 2
        %518 = vperm.xlu0 %517, %v430
        %v519 = vpop.permute.xlu0 %518
        %521 = vset.pattern.permute.xlu0 2
        %522 = vperm.xlu0 %521, %v431
        %v523 = vpop.permute.xlu0 %522
        %v525 = vmul.f32 %v512, %v519
        %v526 = vmul.f32 %v516, %v519
        %v527 = vmul.f32 %v512, %v523
        %v528 = vmul.f32 %v516, %v523
        %v529 = vadd.f32 %v495, %v525
        %v530 = vadd.f32 %v496, %v526
        %v531 = vadd.f32 %v497, %v527
        %v532 = vadd.f32 %v498, %v528
        %v533 = vlaneseq
        %v534 = vshrl.u32 %v533, 7
        %v535 = vsub.s32 3, %v534
        %v536 = vrot.slane %v427, %v535
        %v537 = vlaneseq
        %v538 = vshrl.u32 %v537, 7
        %v539 = vsub.s32 7, %v538
        %v540 = vrot.slane %v427, %v539
        %v543 = vlaneseq
        %v544 = vshrl.u32 %v543, 7
        %v545 = vsub.s32 3, %v544
        %v546 = vrot.slane %v536, %v545
        %v547 = vlaneseq
        %v548 = vshrl.u32 %v547, 7
        %v549 = vsub.s32 3, %v548
        %v550 = vrot.slane %v540, %v549
        %551 = vset.pattern.permute.xlu0 3
        %552 = vperm.xlu0 %551, %v430
        %v553 = vpop.permute.xlu0 %552
        %555 = vset.pattern.permute.xlu0 3
        %556 = vperm.xlu0 %555, %v431
        %v557 = vpop.permute.xlu0 %556
        %v559 = vmul.f32 %v546, %v553
        %v560 = vmul.f32 %v550, %v553
        %v561 = vmul.f32 %v546, %v557
        %v562 = vmul.f32 %v550, %v557
        %v563 = vadd.f32 %v529, %v559
        %v564 = vadd.f32 %v530, %v560
        %v565 = vadd.f32 %v531, %v561
        %v566 = vadd.f32 %v532, %v562
        %v567 = vld [vmem:[%s406] sm:$0xff]
        %v568 = vld [vmem:[%s406 + $0x8] sm:$0xff]
        %570 = vset.pattern.permute.xlu0 0
        %571 = vperm.xlu0 %570, %v567
        %v572 = vpop.permute.xlu0 %571
        %575 = vset.pattern.permute.xlu0 0
        %576 = vperm.xlu0 %575, %v568
        %v577 = vpop.permute.xlu0 %576
        %v579 = vadd.f32 %v563, %v572
        %v580 = vadd.f32 %v564, %v572
        %v581 = vadd.f32 %v565, %v577
        %v582 = vadd.f32 %v566, %v577
        %v583 = vmax.f32 %v579, 0.0
        %v584 = vmax.f32 %v580, 0.0
        %v585 = vmax.f32 %v581, 0.0
        %v586 = vmax.f32 %v582, 0.0
        %v587 = vmin.f32 %v583, 6.0
        %v588 = vmin.f32 %v584, 6.0
        %v589 = vmin.f32 %v585, 6.0
        %v590 = vmin.f32 %v586, 6.0
        %v591 = vld [vmem:[%s7] ss:$4 sm:$0x3]
        %s592 = scalar_lea.vmem %s7, 1
        %v593 = vld [vmem:[%s592] ss:$4 sm:$0x3]
        %s594 = scalar_lea.vmem %s7, 2
        %v595 = vld [vmem:[%s594] ss:$4 sm:$0x3]
        %s596 = scalar_lea.vmem %s7, 3
        %v597 = vld [vmem:[%s596] ss:$4 sm:$0x3]
        %v599 = vlaneseq
        %v600 = vshrl.u32 %v599, 7
        %v601 = vsub.s32 0, %v600
        %v602 = vrot.slane %v591, %v601
        %v603 = vlaneseq
        %v604 = vshrl.u32 %v603, 7
        %v605 = vsub.s32 1, %v604
        %v606 = vrot.slane %v591, %v605
        %v609 = vmul.f32 %v587, %v602
        %v610 = vmul.f32 %v588, %v606
        %v611 = vmul.f32 %v589, %v602
        %v612 = vmul.f32 %v590, %v606
        %v614 = vlaneseq
        %v615 = vshrl.u32 %v614, 7
        %v616 = vsub.s32 0, %v615
        %v617 = vrot.slane %v593, %v616
        %v618 = vlaneseq
        %v619 = vshrl.u32 %v618, 7
        %v620 = vsub.s32 1, %v619
        %v621 = vrot.slane %v593, %v620
        %v624 = vmul.f32 %v587, %v617
        %v625 = vmul.f32 %v588, %v621
        %v626 = vmul.f32 %v589, %v617
        %v627 = vmul.f32 %v590, %v621
        %v628 = vld [vmem:[%s412] sm:$0xff]
        %v629 = vld [vmem:[%s412 + $0x8] sm:$0xff]
        %631 = vset.pattern.permute.xlu0 4
        %632 = vperm.xlu0 %631, %v628
        %v633 = vpop.permute.xlu0 %632
        %636 = vset.pattern.permute.xlu0 4
        %637 = vperm.xlu0 %636, %v629
        %v638 = vpop.permute.xlu0 %637
        %v640 = vmul.f32 %v587, %v633
        %v641 = vmul.f32 %v588, %v633
        %v642 = vmul.f32 %v589, %v638
        %v643 = vmul.f32 %v590, %v638
        %644 = vrot.lane.b32.xlu0 %v609, 1
        %v645 = vpop.permute.xlu0 %644
        %646 = vrot.lane.b32.xlu0 %v611, 1
        %v647 = vpop.permute.xlu0 %646
        %648 = vrot.lane.b32.xlu0 %v610, 1
        %v649 = vpop.permute.xlu0 %648
        %650 = vrot.lane.b32.xlu0 %v612, 1
        %v651 = vpop.permute.xlu0 %650
        %v652 = vlaneseq
        %v653 = vand.u32 %v652, 127
        %vm654 = vcmp.lt.s32.totalorder %v653, 1
        %v655 = vsel %vm654, %v645, %v649
        %v656 = vsel %vm654, %v647, %v651
        %v657 = vsel %vm654, %v649, %v645
        %v658 = vsel %vm654, %v651, %v647
        %659 = vset.pattern.permute.xlu0 3
        %660 = vperm.xlu0 %659, %v628
        %v661 = vpop.permute.xlu0 %660
        %663 = vset.pattern.permute.xlu0 3
        %664 = vperm.xlu0 %663, %v629
        %v665 = vpop.permute.xlu0 %664
        %v667 = vmul.f32 %v657, %v661
        %v668 = vmul.f32 %v655, %v661
        %v669 = vmul.f32 %v658, %v665
        %v670 = vmul.f32 %v656, %v665
        %v671 = vadd.f32 %v640, %v667
        %v672 = vadd.f32 %v641, %v668
        %v673 = vadd.f32 %v642, %v669
        %v674 = vadd.f32 %v643, %v670
        %675 = vrot.lane.b32.xlu0 %v624, 127
        %v676 = vpop.permute.xlu0 %675
        %677 = vrot.lane.b32.xlu0 %v626, 127
        %v678 = vpop.permute.xlu0 %677
        %679 = vrot.lane.b32.xlu0 %v625, 127
        %v680 = vpop.permute.xlu0 %679
        %681 = vrot.lane.b32.xlu0 %v627, 127
        %v682 = vpop.permute.xlu0 %681
        %vm683 = vcmp.lt.s32.totalorder %v653, 127
        %v684 = vsel %vm683, %v676, %v680
        %v685 = vsel %vm683, %v678, %v682
        %v686 = vsel %vm683, %v680, %v676
        %v687 = vsel %vm683, %v682, %v678
        %688 = vset.pattern.permute.xlu0 5
        %689 = vperm.xlu0 %688, %v628
        %v690 = vpop.permute.xlu0 %689
        %692 = vset.pattern.permute.xlu0 5
        %693 = vperm.xlu0 %692, %v629
        %v694 = vpop.permute.xlu0 %693
        %v696 = vmul.f32 %v684, %v690
        %v697 = vmul.f32 %v686, %v690
        %v698 = vmul.f32 %v685, %v694
        %v699 = vmul.f32 %v687, %v694
        %v700 = vadd.f32 %v671, %v696
        %v701 = vadd.f32 %v672, %v697
        %v702 = vadd.f32 %v673, %v698
        %v703 = vadd.f32 %v674, %v699
        %704 = vrot.lane.b32.xlu0 %v609, 17
        %v705 = vpop.permute.xlu0 %704
        %706 = vrot.lane.b32.xlu0 %v611, 17
        %v707 = vpop.permute.xlu0 %706
        %708 = vrot.lane.b32.xlu0 %v610, 17
        %v709 = vpop.permute.xlu0 %708
        %710 = vrot.lane.b32.xlu0 %v612, 17
        %v711 = vpop.permute.xlu0 %710
        %vm712 = vcmp.lt.s32.totalorder %v653, 17
        %v713 = vsel %vm712, %v705, %v709
        %v714 = vsel %vm712, %v707, %v711
        %v715 = vsel %vm712, %v709, %v705
        %v716 = vsel %vm712, %v711, %v707
        %717 = vset.pattern.permute.xlu0 0
        %718 = vperm.xlu0 %717, %v628
        %v719 = vpop.permute.xlu0 %718
        %721 = vset.pattern.permute.xlu0 0
        %722 = vperm.xlu0 %721, %v629
        %v723 = vpop.permute.xlu0 %722
        %v725 = vmul.f32 %v715, %v719
        %v726 = vmul.f32 %v713, %v719
        %v727 = vmul.f32 %v716, %v723
        %v728 = vmul.f32 %v714, %v723
        %729 = vrot.lane.b32.xlu0 %v587, 16
        %v730 = vpop.permute.xlu0 %729
        %731 = vrot.lane.b32.xlu0 %v589, 16
        %v732 = vpop.permute.xlu0 %731
        %733 = vrot.lane.b32.xlu0 %v588, 16
        %v734 = vpop.permute.xlu0 %733
        %735 = vrot.lane.b32.xlu0 %v590, 16
        %v736 = vpop.permute.xlu0 %735
        %vm737 = vcmp.lt.s32.totalorder %v653, 16
        %v738 = vsel %vm737, %v730, %v734
        %v739 = vsel %vm737, %v732, %v736
        %v740 = vsel %vm737, %v734, %v730
        %v741 = vsel %vm737, %v736, %v732
        %742 = vset.pattern.permute.xlu0 1
        %743 = vperm.xlu0 %742, %v628
        %v744 = vpop.permute.xlu0 %743
        %746 = vset.pattern.permute.xlu0 1
        %747 = vperm.xlu0 %746, %v629
        %v748 = vpop.permute.xlu0 %747
        %v750 = vmul.f32 %v740, %v744
        %v751 = vmul.f32 %v738, %v744
        %v752 = vmul.f32 %v741, %v748
        %v753 = vmul.f32 %v739, %v748
        %v754 = vadd.f32 %v725, %v750
        %v755 = vadd.f32 %v726, %v751
        %v756 = vadd.f32 %v727, %v752
        %v757 = vadd.f32 %v728, %v753
        %758 = vrot.lane.b32.xlu0 %v624, 15
        %v759 = vpop.permute.xlu0 %758
        %760 = vrot.lane.b32.xlu0 %v626, 15
        %v761 = vpop.permute.xlu0 %760
        %762 = vrot.lane.b32.xlu0 %v625, 15
        %v763 = vpop.permute.xlu0 %762
        %764 = vrot.lane.b32.xlu0 %v627, 15
        %v765 = vpop.permute.xlu0 %764
        %vm766 = vcmp.lt.s32.totalorder %v653, 15
        %v767 = vsel %vm766, %v759, %v763
        %v768 = vsel %vm766, %v761, %v765
        %v769 = vsel %vm766, %v763, %v759
        %v770 = vsel %vm766, %v765, %v761
        %771 = vset.pattern.permute.xlu0 2
        %772 = vperm.xlu0 %771, %v628
        %v773 = vpop.permute.xlu0 %772
        %775 = vset.pattern.permute.xlu0 2
        %776 = vperm.xlu0 %775, %v629
        %v777 = vpop.permute.xlu0 %776
        %v779 = vmul.f32 %v769, %v773
        %v780 = vmul.f32 %v767, %v773
        %v781 = vmul.f32 %v770, %v777
        %v782 = vmul.f32 %v768, %v777
        %v783 = vadd.f32 %v754, %v779
        %v784 = vadd.f32 %v755, %v780
        %v785 = vadd.f32 %v756, %v781
        %v786 = vadd.f32 %v757, %v782
        %787 = vrot.lane.b32.xlu0 %v609, 113
        %v788 = vpop.permute.xlu0 %787
        %789 = vrot.lane.b32.xlu0 %v611, 113
        %v790 = vpop.permute.xlu0 %789
        %791 = vrot.lane.b32.xlu0 %v610, 113
        %v792 = vpop.permute.xlu0 %791
        %793 = vrot.lane.b32.xlu0 %v612, 113
        %v794 = vpop.permute.xlu0 %793
        %vm795 = vcmp.lt.s32.totalorder %v653, 113
        %v796 = vsel %vm795, %v788, %v792
        %v797 = vsel %vm795, %v790, %v794
        %v798 = vsel %vm795, %v792, %v788
        %v799 = vsel %vm795, %v794, %v790
        %800 = vset.pattern.permute.xlu0 6
        %801 = vperm.xlu0 %800, %v628
        %v802 = vpop.permute.xlu0 %801
        %804 = vset.pattern.permute.xlu0 6
        %805 = vperm.xlu0 %804, %v629
        %v806 = vpop.permute.xlu0 %805
        %v808 = vmul.f32 %v796, %v802
        %v809 = vmul.f32 %v798, %v802
        %v810 = vmul.f32 %v797, %v806
        %v811 = vmul.f32 %v799, %v806
        %812 = vrot.lane.b32.xlu0 %v587, 112
        %v813 = vpop.permute.xlu0 %812
        %814 = vrot.lane.b32.xlu0 %v589, 112
        %v815 = vpop.permute.xlu0 %814
        %816 = vrot.lane.b32.xlu0 %v588, 112
        %v817 = vpop.permute.xlu0 %816
        %818 = vrot.lane.b32.xlu0 %v590, 112
        %v819 = vpop.permute.xlu0 %818
        %vm820 = vcmp.lt.s32.totalorder %v653, 112
        %v821 = vsel %vm820, %v813, %v817
        %v822 = vsel %vm820, %v815, %v819
        %v823 = vsel %vm820, %v817, %v813
        %v824 = vsel %vm820, %v819, %v815
        %825 = vset.pattern.permute.xlu0 7
        %826 = vperm.xlu0 %825, %v628
        %v827 = vpop.permute.xlu0 %826
        %829 = vset.pattern.permute.xlu0 7
        %830 = vperm.xlu0 %829, %v629
        %v831 = vpop.permute.xlu0 %830
        %v833 = vmul.f32 %v821, %v827
        %v834 = vmul.f32 %v823, %v827
        %v835 = vmul.f32 %v822, %v831
        %v836 = vmul.f32 %v824, %v831
        %v837 = vadd.f32 %v808, %v833
        %v838 = vadd.f32 %v809, %v834
        %v839 = vadd.f32 %v810, %v835
        %v840 = vadd.f32 %v811, %v836
        %841 = vrot.lane.b32.xlu0 %v624, 111
        %v842 = vpop.permute.xlu0 %841
        %843 = vrot.lane.b32.xlu0 %v626, 111
        %v844 = vpop.permute.xlu0 %843
        %845 = vrot.lane.b32.xlu0 %v625, 111
        %v846 = vpop.permute.xlu0 %845
        %847 = vrot.lane.b32.xlu0 %v627, 111
        %v848 = vpop.permute.xlu0 %847
        %vm849 = vcmp.lt.s32.totalorder %v653, 111
        %v850 = vsel %vm849, %v842, %v846
        %v851 = vsel %vm849, %v844, %v848
        %v852 = vsel %vm849, %v846, %v842
        %v853 = vsel %vm849, %v848, %v844
        %854 = vset.pattern.permute.xlu0 8
        %855 = vperm.xlu0 %854, %v628
        %v856 = vpop.permute.xlu0 %855
        %858 = vset.pattern.permute.xlu0 8
        %859 = vperm.xlu0 %858, %v629
        %v860 = vpop.permute.xlu0 %859
        %v862 = vmul.f32 %v850, %v856
        %v863 = vmul.f32 %v852, %v856
        %v864 = vmul.f32 %v851, %v860
        %v865 = vmul.f32 %v853, %v860
        %v866 = vadd.f32 %v837, %v862
        %v867 = vadd.f32 %v838, %v863
        %v868 = vadd.f32 %v839, %v864
        %v869 = vadd.f32 %v840, %v865
        %v871 = vlaneseq
        %v872 = vshrl.u32 %v871, 7
        %v873 = vsub.s32 0, %v872
        %v874 = vrot.slane %v595, %v873
        %v875 = vlaneseq
        %v876 = vshrl.u32 %v875, 7
        %v877 = vsub.s32 1, %v876
        %v878 = vrot.slane %v595, %v877
        %v881 = vmul.f32 %v783, %v874
        %v882 = vmul.f32 %v784, %v878
        %v883 = vmul.f32 %v785, %v874
        %v884 = vmul.f32 %v786, %v878
        %v885 = vadd.f32 %v700, %v881
        %v886 = vadd.f32 %v701, %v882
        %v887 = vadd.f32 %v702, %v883
        %v888 = vadd.f32 %v703, %v884
        %v890 = vlaneseq
        %v891 = vshrl.u32 %v890, 7
        %v892 = vsub.s32 0, %v891
        %v893 = vrot.slane %v597, %v892
        %v894 = vlaneseq
        %v895 = vshrl.u32 %v894, 7
        %v896 = vsub.s32 1, %v895
        %v897 = vrot.slane %v597, %v896
        %v900 = vmul.f32 %v866, %v893
        %v901 = vmul.f32 %v867, %v897
        %v902 = vmul.f32 %v868, %v893
        %v903 = vmul.f32 %v869, %v897
        %v904 = vadd.f32 %v885, %v900
        %v905 = vadd.f32 %v886, %v901
        %v906 = vadd.f32 %v887, %v902
        %v907 = vadd.f32 %v888, %v903
        %v908 = vld [vmem:[%s418] sm:$0xff]
        %v909 = vld [vmem:[%s418 + $0x8] sm:$0xff]
        %911 = vset.pattern.permute.xlu0 0
        %912 = vperm.xlu0 %911, %v908
        %v913 = vpop.permute.xlu0 %912
        %916 = vset.pattern.permute.xlu0 0
        %917 = vperm.xlu0 %916, %v909
        %v918 = vpop.permute.xlu0 %917
        %v920 = vadd.f32 %v904, %v913
        %v921 = vadd.f32 %v905, %v913
        %v922 = vadd.f32 %v906, %v918
        %v923 = vadd.f32 %v907, %v918
        %v924 = vmax.f32 %v920, 0.0
        %v925 = vmax.f32 %v921, 0.0
        %v926 = vmax.f32 %v922, 0.0
        %v927 = vmax.f32 %v923, 0.0
        %v928 = vmin.f32 %v924, 6.0
        %v929 = vmin.f32 %v925, 6.0
        %v930 = vmin.f32 %v926, 6.0
        %v931 = vmin.f32 %v927, 6.0
        %p932 = scmp.eq.s32.totalorder %s27, 0
        // Predicated region
        $region53: #{tpu_custom_call.1} parent=51 // pred_check
          %p933 = pneg %p932
        $region54: #{tpu_custom_call.1} parent=51 // pred_check_branch
          %935 = sbr.rel (%p933) target = $region56
        $region55: #{tpu_custom_call.1} parent=51 // pred_region
          %936 = vst [vmem:[#allocation2] sm:$0xff] 0.0
        $region56: #{tpu_custom_call.1} parent=51 // pred_fallthru
          _
        %v937 = vld [vmem:[#allocation2] sm:$0xff]
        %v938 = vld [vmem:[%s424] sm:$0xf]
        %v939 = vld [vmem:[%s424 + $0x4] sm:$0xf]
        %v940 = vpack.c.bf16 %v930, %v928
        %v941 = vpack.c.bf16 %v931, %v929
        %v944 = vunpack.c.l.b16 %v938
        %v945 = vunpack.c.l.b16 %v939
        %v946 = vpack.c.b16 %v945, %v944
        %948 = vxpose.xlu0.c.b16.start [1/8] %v946, 128
        %949 = vxpose.xlu0.c.b16.cont [2/8] 0, 128
        %950 = vxpose.xlu0.c.b16.cont [3/8] 0, 128
        %951 = vxpose.xlu0.c.b16.cont [4/8] 0, 128
        %952 = vxpose.xlu0.c.b16.cont [5/8] 0, 128
        %953 = vxpose.xlu0.c.b16.cont [6/8] 0, 128
        %954 = vxpose.xlu0.c.b16.cont [7/8] 0, 128
        %955 = vxpose.xlu0.c.b16.end [8/8] 0, 128
        %v956 = vpop.trf.xlu0
        %v957 = vpop.trf.xlu0
        %v958 = vpop.trf.xlu0
        %v959 = vpop.trf.xlu0
        %v960 = vpop.trf.xlu0
        %v961 = vpop.trf.xlu0
        %v962 = vpop.trf.xlu0
        %v963 = vpop.trf.xlu0
        %vm964 = vcmask 130048
        %v966 = vsel %vm964, %v956, 0
        %968 = vmatprep.subr.bf16.mxu0 0
        %969 = vmatpush1.bf16.msra.mxu0 0
        %970 = vmatprep.subr.bf16.mxu0 0
        %971 = vmatpush1.bf16.msra.mxu0 0
        %972 = vmatprep.subr.bf16.mxu0 0
        %973 = vmatpush1.bf16.msra.mxu0 0
        %974 = vmatprep.subr.bf16.mxu0 0
        %975 = vmatpush1.bf16.msra.mxu0 0
        %976 = vmatprep.subr.bf16.mxu0 0
        %977 = vmatpush1.bf16.msra.mxu0 0
        %978 = vmatprep.subr.bf16.mxu0 0
        %979 = vmatpush1.bf16.msra.mxu0 0
        %980 = vmatprep.subr.bf16.mxu0 0
        %981 = vmatpush1.bf16.msra.mxu0 0
        %982 = vmatprep.subr.bf16.mxu0 %v941
        %983 = vmatpush1.bf16.msra.mxu0 %v940
        %984 = vmatprep.subr.bf16.mxu0 0
        %985 = vmatpush2.bf16.msra.mxu0 0
        %986 = vmatprep.subr.bf16.mxu0 0
        %987 = vmatpush2.bf16.msra.mxu0 0
        %988 = vmatprep.subr.bf16.mxu0 0
        %989 = vmatpush2.bf16.msra.mxu0 0
        %990 = vmatprep.subr.bf16.mxu0 0
        %991 = vmatpush2.bf16.msra.mxu0 0
        %992 = vmatprep.subr.bf16.mxu0 0
        %993 = vmatpush2.bf16.msra.mxu0 0
        %994 = vmatprep.subr.bf16.mxu0 0
        %995 = vmatpush2.bf16.msra.mxu0 0
        %996 = vmatprep.subr.bf16.mxu0 0
        %997 = vmatpush2.bf16.msra.mxu0 0
        %998 = vmatprep.subr.bf16.mxu0 0
        %999 = vmatpush2.bf16.msra.mxu0 0
        %1000 = vmatprep.mubr.bf16.mxu0 0
        %1001 = vmatmul.mubr.bf16.gmra.mxu0 %v966
        %v1002 = vpop.f32.mrf.mxu0
        %v1003 = vadd.f32 0.0, %v1002
        %v1004 = vpop.f32.mrf.mxu0
        %v1005 = vadd.f32 0.0, %v1004
        %v1006 = vpop.f32.mrf.mxu0
        %v1007 = vpop.f32.mrf.mxu0
        %1008 = vdwg.mxu0
        %v1011 = vcombine.low %v1003, %v1005
        %v1013 = vadd.f32 %v937, %v1011
        %1014 = vst [vmem:[#allocation2] sm:$0xff] %v1013
        // Predicated region
        $region57: #{tpu_custom_call.1} parent=51 // pred_check
          %p1015 = pneg %p932
        $region58: #{tpu_custom_call.1} parent=51 // pred_check_branch
          %1017 = sbr.rel (%p1015) target = $region60
        $region59: #{tpu_custom_call.1} parent=51 // pred_region
          %v1018 = vld [vmem:[#allocation2] sm:$0xff]
          %v1019 = vld [vmem:[%s6] sm:$0xf]
          %1021 = vset.pattern.permute.xlu0 0
          %1022 = vperm.xlu0 %1021, %v1019
          %v1023 = vpop.permute.xlu0 %1022
          %v1025 = vunpack.c.l.s4 839922192
          %v1026 = vunpack.c.0.s8 %v1025
          %v1027 = vlaneseq
          %v1028 = vshrl.u32 %v1027, 7
          %v1029 = vsub.s32 %v1026, %v1028
          %v1030 = vrot.slane %v1023, %v1029
          %v1032 = vadd.f32 %v1018, %v1030
          %v1033 = vadd.f32 %v1032, %v427
          %1034 = vst [vmem:[%s390] sm:$0xff] %v1033
        $region60: #{tpu_custom_call.1} parent=51 // pred_fallthru
          _
        %s1035 = sand.u32 %s240, 1
        %s1036 = scalar_lea.sflag [#allocation4], %s1035
        %s1037 = sand.u32 %s240, 1
        %s1038 = smul.addr %s1037, 8
        %s1039 = scalar_lea.vmem [#allocation3], %s1038
        // Predicated region
        $region61: #{tpu_custom_call.1} parent=51 // pred_check
          %p1040 = pneg %p250
        $region62: #{tpu_custom_call.1} parent=51 // pred_check_branch
          %1042 = sbr.rel (%p1040) target = $region64
        $region63: #{tpu_custom_call.1} parent=51 // pred_region
          %s1044 = ssub.s32 128, 128
          %1045 = vsyncadd %s1036, %s1044
          %s1046 = smul.addr %s26, 2
          %s1047 = smul.addr %s1046, 64
          %s1048 = scalar_lea.hbm %s8, %s1047
          %s1050 = sshll.u32 %s1039, 4
          %s1051 = int_to_ptr.vmem [resolvable:$true] %s1050
          %1053 = dma.vmem_to_hbm [thread:$0]  %s1051, 128, %s1048, %s1036
        $region64: #{tpu_custom_call.1} parent=51 // pred_fallthru
          _
      $region52: #{tpu_custom_call.1} parent=5 // pred_fallthru
        _
      %p1054 = scmp.le.s32.totalorder 2, %s17
      // Predicated region
      $region65: #{tpu_custom_call.1} parent=5 // pred_check
        %p1055 = pneg %p1054
      $region66: #{tpu_custom_call.1} parent=5 // pred_check_branch
        %1057 = sbr.rel (%p1055) target = $region68
      $region67: #{tpu_custom_call.1} parent=5 // pred_region
        %s1058 = ssub.s32 %s17, 2
        // Predicated region
        $region69: #{tpu_custom_call.1} parent=67 // pred_check
          %p1059 = pneg %p256
        $region70: #{tpu_custom_call.1} parent=67 // pred_check_branch
          %1061 = sbr.rel (%p1059) target = $region72
        $region71: #{tpu_custom_call.1} parent=67 // pred_region
          %s1062 = sand.u32 %s241, 1
          %s1063 = scalar_lea.sflag [#allocation4], %s1062
          %s1064 = sand.u32 %s241, 1
          %s1065 = smul.addr %s1064, 8
          %s1066 = scalar_lea.vmem [#allocation3], %s1065
          %1067 = dma.done %s1063, 128
        $region72: #{tpu_custom_call.1} parent=67 // pred_fallthru
          _
      $region68: #{tpu_custom_call.1} parent=5 // pred_fallthru
        _
    $region6: #{tpu_custom_call.1} parent=1 // loop_footer
      %s21 = sadd.s32 1, %s17
    $region7: #{tpu_custom_call.1} parent=1 // loop_footer_branch
      %16 = sbr.rel target = $region3
    $region8: #{tpu_custom_call.1} parent=1 // loop_exit
      _
    %1068 = vsyncpa [#allocation4], 1
    %s1069 = scalar_lea.sflag [#allocation4], 1
    %1070 = vsyncpa %s1069, 1

</llo_original>
